<compile_context>
chip_gen: v7x
topology: tpu7x:2x2x1
jax: 0.10.0
libtpu: 0.0.40
codegen_flags: <defaults>
</compile_context>

<pallas_src>
import numpy as np

import jax
import jax.numpy as jnp
from jax import lax
from jax.experimental import pallas as pl

# ---------------- fixed problem geometry (input (3,1,4,4)) ----------------
N = 3
H_OUT, W_OUT = 6, 12              # spatial size after F.pad(..., (4,4,1,1))
H_PAD = H_OUT + 2                 # +1 zero ring shared by both convs' padding=1
W_STRIDE = 16                     # padded row width -> each batch slab = 8*16 = 128 lanes
SLAB = H_PAD * W_STRIDE           # 128
S = N * SLAB                      # 384 lanes = exactly 3 lane tiles
C1, C2 = 12, 24
C1P = 16                          # conv1 channels padded to a full sublane tile
K2 = 9 * C1P                      # 144: im2col contraction depth of conv2

# tap t = kh*3 + kw  ->  flat lane offset d
TAPS = tuple((kh - 1) * W_STRIDE + (kw - 1) for kh in range(3) for kw in range(3))

# Static safety of the roll-based tap shifts (see review): interior output
# positions must only read lanes inside [0, S) and inside their own 128-lane
# batch slab, so jnp.roll wrap-around can only touch ring lanes (masked or
# discarded).  Both reduce to W_OUT + 1 < W_STRIDE (and H_PAD == H_OUT + 2).
assert H_PAD == H_OUT + 2
assert W_OUT + 1 < W_STRIDE
assert SLAB % 128 == 0 and S % 128 == 0
assert max(abs(d) for d in TAPS) <= W_STRIDE + 1


def _fused_conv_kernel(x_ref, mask_ref, w1_ref, b1_ref, w2_ref, b2_ref, o_ref):
    """Both 3x3 convs for the whole batch; single invocation, no VMEM scratch.

    x_ref   : (1, S)     value-1 padded input + zero ring, flattened (n,hp,wp)
                         on the lane axis; each batch slab is exactly 128 lanes
    mask_ref: (1, S)     1.0 at interior (valid) positions, 0.0 elsewhere
    w1_ref  : (C1P, 9)   conv1 weights [c_out, kh*3+kw], zero-padded to 16 rows
    b1_ref  : (C1P, 1)   zero-padded bias
    w2_ref  : (C2, K2)   conv2 weights [c_out, (kh*3+kw)*16 + c_in] (c_in zero-padded)
    b2_ref  : (C2, 1)
    o_ref   : (C2, S)    conv2 output over the whole padded slab
    """
    x = x_ref[...]                                          # (1, S)
    mask = mask_ref[...]                                    # (1, S)
    w1 = w1_ref[...]                                        # (C1P, 9)

    # ---- conv1: 1 -> 12 channels. Nine rank-1 VPU MACs over all 384 lanes,
    #      accumulated in registers. Tap shift = static-shift jnp.roll; the
    #      wrapped lanes only land on ring positions which the mask zeroes.
    acc1 = None
    for t, d in enumerate(TAPS):
        x_sh = x if d == 0 else jnp.roll(x, -d, axis=1)     # (1, S)
        term = w1[:, t:t + 1] * x_sh                        # (C1P, S)
        acc1 = term if acc1 is None else acc1 + term
    # bias once; ring forced to 0 (== conv2's zero padding). Padded rows 12..15
    # stay 0 because their weights and biases are 0.
    mid = (acc1 + b1_ref[...]) * mask                       # (C1P, S)

    # ---- conv2: 12 -> 24 channels. Build a sublane-aligned im2col stack of
    #      the 9 tap-shifted conv1 results (16-row blocks) and do ONE MXU
    #      matmul so the K-reduction happens inside the MXU.
    blocks = [mid if d == 0 else jnp.roll(mid, -d, axis=1) for d in TAPS]
    stack = jnp.concatenate(blocks, axis=0)                 # (K2, S) = (144, 384)
    out = jnp.dot(w2_ref[...], stack,
                  preferred_element_type=jnp.float32)       # (C2, S)

    # lane-dense, fully unmasked stores (24 rows x 384 lanes = 3x3 whole vregs)
    o_ref[...] = out + b2_ref[...]


def model_forward(x1, w1, b1, w2, b2):
    # NOTE: v2 = x1.transpose(1, 3) in the PyTorch module is dead code (unused).
    # Input prep (tiny, fuses into one XLA op):
    #   F.pad value-1 -> (3,6,12); zero ring for both convs' padding=1 plus two
    #   dead zero columns so each padded batch slab is exactly 128 lanes
    #   -> (3,8,16); flatten onto the lane axis -> (1,384).
    v1 = jnp.pad(x1[:, 0], ((0, 0), (1, 1), (4, 4)), constant_values=1.0)     # (3, 6, 12)
    xp = jnp.pad(v1, ((0, 0), (1, 1), (1, W_STRIDE - W_OUT - 1)))             # (3, 8, 16)
    x_row = xp.reshape(1, S)

    # Interior mask: trace-time numpy constant (no runtime op).
    m = np.zeros((N, H_PAD, W_STRIDE), np.float32)
    m[:, 1:1 + H_OUT, 1:1 + W_OUT] = 1.0
    mask = jnp.asarray(m.reshape(1, S))

    # Weight repack (tiny / one-time): tap-major, channel-padded layouts.
    w1k = jnp.pad(w1.reshape(C1, 9), ((0, C1P - C1), (0, 0)))                 # (16, 9)
    b1k = jnp.pad(b1.reshape(C1, 1), ((0, C1P - C1), (0, 0)))                 # (16, 1)
    w2k = jnp.pad(jnp.transpose(w2, (0, 2, 3, 1)),                            # (24,3,3,12)
                  ((0, 0), (0, 0), (0, 0), (0, C1P - C1))).reshape(C2, K2)    # (24, 144)
    b2k = b2.reshape(C2, 1)

    out_slab = pl.pallas_call(
        _fused_conv_kernel,
        out_shape=jax.ShapeDtypeStruct((C2, S), jnp.float32),
        cost_estimate=pl.CostEstimate(
            flops=2 * C1 * 9 * S + 2 * C2 * K2 * S,
            transcendentals=0,
            bytes_accessed=4 * (2 * S + C1P * 10 + C2 * (K2 + 1) + C2 * S),
        ),
    )(x_row, mask, w1k, b1k, w2k, b2k)

    # Interior gather + NCHW flatten: one tiny XLA op on a 36 KB slab.
    v4 = out_slab.reshape(C2, N, H_PAD, W_STRIDE)[:, :, 1:1 + H_OUT, 1:1 + W_OUT]
    return jnp.transpose(v4, (1, 0, 2, 3)).reshape(-1)      # (N*C2*H_OUT*W_OUT,)


def _ref_forward(x1, w1, b1, w2, b2):
    """Pure-JAX reference of the PyTorch forward."""
    v1 = jnp.pad(x1, ((0, 0), (0, 0), (1, 1), (4, 4)), constant_values=1.0)
    dn = ('NCHW', 'OIHW', 'NCHW')
    v3 = lax.conv_general_dilated(v1, w1, (1, 1), ((1, 1), (1, 1)),
                                  dimension_numbers=dn) + b1[None, :, None, None]
    v4 = lax.conv_general_dilated(v3, w2, (1, 1), ((1, 1), (1, 1)),
                                  dimension_numbers=dn) + b2[None, :, None, None]
    return v4.reshape(-1)


if __name__ == "__main__":
    key = jax.random.PRNGKey(0)
    kx, k1, k2, k3, k4 = jax.random.split(key, 5)

    # Deterministic synthetic parameters (shapes from the module's __init__).
    x1 = jax.random.normal(kx, (3, 1, 4, 4), jnp.float32)
    w1 = jax.random.normal(k1, (12, 1, 3, 3), jnp.float32) * 0.2
    b1 = jax.random.normal(k2, (12,), jnp.float32) * 0.1
    w2 = jax.random.normal(k3, (24, 12, 3, 3), jnp.float32) * 0.2
    b2 = jax.random.normal(k4, (24,), jnp.float32) * 0.1

    out = jax.jit(model_forward)(x1, w1, b1, w2, b2)
    out = jax.block_until_ready(out)

    ref = _ref_forward(x1, w1, b1, w2, b2)
    assert out.shape == (N * C2 * H_OUT * W_OUT,), out.shape
    max_err = float(jnp.max(jnp.abs(out - ref)))
    assert jnp.allclose(out, ref, atol=5e-3, rtol=5e-3), max_err
    print("KERNEL_OK")
</pallas_src>

<mosaic_0001>
module attributes {stable_mosaic.version = 11 : i64} {
  func.func @_fused_conv_kernel(%arg0: memref<1x384xf32, #tpu.memory_space<vmem>>, %arg1: memref<1x384xf32, #tpu.memory_space<vmem>>, %arg2: memref<16x9xf32, #tpu.memory_space<vmem>>, %arg3: memref<16x1xf32, #tpu.memory_space<vmem>>, %arg4: memref<24x144xf32, #tpu.memory_space<vmem>>, %arg5: memref<24x1xf32, #tpu.memory_space<vmem>>, %arg6: memref<24x384xf32, #tpu.memory_space<vmem>>) attributes {dimension_semantics = [], scalar_prefetch = 0 : i64, scratch_operands = 0 : i64, tpu.core_type = #tpu.core_type<tc>} {
    %c0 = arith.constant 0 : index
    %c0_0 = arith.constant 0 : index
    %0 = vector.load %arg0[%c0, %c0_0] : memref<1x384xf32, #tpu.memory_space<vmem>>, vector<1x384xf32>
    %c0_1 = arith.constant 0 : index
    %c0_2 = arith.constant 0 : index
    %1 = vector.load %arg1[%c0_1, %c0_2] : memref<1x384xf32, #tpu.memory_space<vmem>>, vector<1x384xf32>
    %c0_3 = arith.constant 0 : index
    %c0_4 = arith.constant 0 : index
    %2 = vector.load %arg2[%c0_3, %c0_4] : memref<16x9xf32, #tpu.memory_space<vmem>>, vector<16x9xf32>
    %3 = vector.extract_strided_slice %0 {offsets = [0, 367], sizes = [1, 17], strides = [1, 1]} : vector<1x384xf32> to vector<1x17xf32>
    %4 = vector.extract_strided_slice %0 {offsets = [0, 0], sizes = [1, 367], strides = [1, 1]} : vector<1x384xf32> to vector<1x367xf32>
    %5 = tpu.concatenate %3, %4 in 1 : vector<1x17xf32>, vector<1x367xf32> -> vector<1x384xf32>
    %6 = vector.extract_strided_slice %2 {offsets = [0, 0], sizes = [16, 1], strides = [1, 1]} : vector<16x9xf32> to vector<16x1xf32>
    %7 = vector.broadcast %6 : vector<16x1xf32> to vector<16x384xf32>
    %8 = vector.broadcast %5 : vector<1x384xf32> to vector<16x384xf32>
    %9 = arith.mulf %7, %8 : vector<16x384xf32>
    %10 = vector.extract_strided_slice %0 {offsets = [0, 368], sizes = [1, 16], strides = [1, 1]} : vector<1x384xf32> to vector<1x16xf32>
    %11 = vector.extract_strided_slice %0 {offsets = [0, 0], sizes = [1, 368], strides = [1, 1]} : vector<1x384xf32> to vector<1x368xf32>
    %12 = tpu.concatenate %10, %11 in 1 : vector<1x16xf32>, vector<1x368xf32> -> vector<1x384xf32>
    %13 = vector.extract_strided_slice %2 {offsets = [0, 1], sizes = [16, 1], strides = [1, 1]} : vector<16x9xf32> to vector<16x1xf32>
    %14 = vector.broadcast %13 : vector<16x1xf32> to vector<16x384xf32>
    %15 = vector.broadcast %12 : vector<1x384xf32> to vector<16x384xf32>
    %16 = arith.mulf %14, %15 : vector<16x384xf32>
    %17 = arith.addf %9, %16 : vector<16x384xf32>
    %18 = vector.extract_strided_slice %0 {offsets = [0, 369], sizes = [1, 15], strides = [1, 1]} : vector<1x384xf32> to vector<1x15xf32>
    %19 = vector.extract_strided_slice %0 {offsets = [0, 0], sizes = [1, 369], strides = [1, 1]} : vector<1x384xf32> to vector<1x369xf32>
    %20 = tpu.concatenate %18, %19 in 1 : vector<1x15xf32>, vector<1x369xf32> -> vector<1x384xf32>
    %21 = vector.extract_strided_slice %2 {offsets = [0, 2], sizes = [16, 1], strides = [1, 1]} : vector<16x9xf32> to vector<16x1xf32>
    %22 = vector.broadcast %21 : vector<16x1xf32> to vector<16x384xf32>
    %23 = vector.broadcast %20 : vector<1x384xf32> to vector<16x384xf32>
    %24 = arith.mulf %22, %23 : vector<16x384xf32>
    %25 = arith.addf %17, %24 : vector<16x384xf32>
    %26 = vector.extract_strided_slice %0 {offsets = [0, 383], sizes = [1, 1], strides = [1, 1]} : vector<1x384xf32> to vector<1x1xf32>
    %27 = vector.extract_strided_slice %0 {offsets = [0, 0], sizes = [1, 383], strides = [1, 1]} : vector<1x384xf32> to vector<1x383xf32>
    %28 = tpu.concatenate %26, %27 in 1 : vector<1x1xf32>, vector<1x383xf32> -> vector<1x384xf32>
    %29 = vector.extract_strided_slice %2 {offsets = [0, 3], sizes = [16, 1], strides = [1, 1]} : vector<16x9xf32> to vector<16x1xf32>
    %30 = vector.broadcast %29 : vector<16x1xf32> to vector<16x384xf32>
    %31 = vector.broadcast %28 : vector<1x384xf32> to vector<16x384xf32>
    %32 = arith.mulf %30, %31 : vector<16x384xf32>
    %33 = arith.addf %25, %32 : vector<16x384xf32>
    %34 = vector.extract_strided_slice %2 {offsets = [0, 4], sizes = [16, 1], strides = [1, 1]} : vector<16x9xf32> to vector<16x1xf32>
    %35 = vector.broadcast %34 : vector<16x1xf32> to vector<16x384xf32>
    %36 = vector.broadcast %0 : vector<1x384xf32> to vector<16x384xf32>
    %37 = arith.mulf %35, %36 : vector<16x384xf32>
    %38 = arith.addf %33, %37 : vector<16x384xf32>
    %39 = vector.extract_strided_slice %0 {offsets = [0, 1], sizes = [1, 383], strides = [1, 1]} : vector<1x384xf32> to vector<1x383xf32>
    %40 = vector.extract_strided_slice %0 {offsets = [0, 0], sizes = [1, 1], strides = [1, 1]} : vector<1x384xf32> to vector<1x1xf32>
    %41 = tpu.concatenate %39, %40 in 1 : vector<1x383xf32>, vector<1x1xf32> -> vector<1x384xf32>
    %42 = vector.extract_strided_slice %2 {offsets = [0, 5], sizes = [16, 1], strides = [1, 1]} : vector<16x9xf32> to vector<16x1xf32>
    %43 = vector.broadcast %42 : vector<16x1xf32> to vector<16x384xf32>
    %44 = vector.broadcast %41 : vector<1x384xf32> to vector<16x384xf32>
    %45 = arith.mulf %43, %44 : vector<16x384xf32>
    %46 = arith.addf %38, %45 : vector<16x384xf32>
    %47 = vector.extract_strided_slice %0 {offsets = [0, 15], sizes = [1, 369], strides = [1, 1]} : vector<1x384xf32> to vector<1x369xf32>
    %48 = vector.extract_strided_slice %0 {offsets = [0, 0], sizes = [1, 15], strides = [1, 1]} : vector<1x384xf32> to vector<1x15xf32>
    %49 = tpu.concatenate %47, %48 in 1 : vector<1x369xf32>, vector<1x15xf32> -> vector<1x384xf32>
    %50 = vector.extract_strided_slice %2 {offsets = [0, 6], sizes = [16, 1], strides = [1, 1]} : vector<16x9xf32> to vector<16x1xf32>
    %51 = vector.broadcast %50 : vector<16x1xf32> to vector<16x384xf32>
    %52 = vector.broadcast %49 : vector<1x384xf32> to vector<16x384xf32>
    %53 = arith.mulf %51, %52 : vector<16x384xf32>
    %54 = arith.addf %46, %53 : vector<16x384xf32>
    %55 = vector.extract_strided_slice %0 {offsets = [0, 16], sizes = [1, 368], strides = [1, 1]} : vector<1x384xf32> to vector<1x368xf32>
    %56 = vector.extract_strided_slice %0 {offsets = [0, 0], sizes = [1, 16], strides = [1, 1]} : vector<1x384xf32> to vector<1x16xf32>
    %57 = tpu.concatenate %55, %56 in 1 : vector<1x368xf32>, vector<1x16xf32> -> vector<1x384xf32>
    %58 = vector.extract_strided_slice %2 {offsets = [0, 7], sizes = [16, 1], strides = [1, 1]} : vector<16x9xf32> to vector<16x1xf32>
    %59 = vector.broadcast %58 : vector<16x1xf32> to vector<16x384xf32>
    %60 = vector.broadcast %57 : vector<1x384xf32> to vector<16x384xf32>
    %61 = arith.mulf %59, %60 : vector<16x384xf32>
    %62 = arith.addf %54, %61 : vector<16x384xf32>
    %63 = vector.extract_strided_slice %0 {offsets = [0, 17], sizes = [1, 367], strides = [1, 1]} : vector<1x384xf32> to vector<1x367xf32>
    %64 = vector.extract_strided_slice %0 {offsets = [0, 0], sizes = [1, 17], strides = [1, 1]} : vector<1x384xf32> to vector<1x17xf32>
    %65 = tpu.concatenate %63, %64 in 1 : vector<1x367xf32>, vector<1x17xf32> -> vector<1x384xf32>
    %66 = vector.extract_strided_slice %2 {offsets = [0, 8], sizes = [16, 1], strides = [1, 1]} : vector<16x9xf32> to vector<16x1xf32>
    %67 = vector.broadcast %66 : vector<16x1xf32> to vector<16x384xf32>
    %68 = vector.broadcast %65 : vector<1x384xf32> to vector<16x384xf32>
    %69 = arith.mulf %67, %68 : vector<16x384xf32>
    %70 = arith.addf %62, %69 : vector<16x384xf32>
    %c0_5 = arith.constant 0 : index
    %c0_6 = arith.constant 0 : index
    %71 = vector.load %arg3[%c0_5, %c0_6] : memref<16x1xf32, #tpu.memory_space<vmem>>, vector<16x1xf32>
    %72 = vector.broadcast %71 : vector<16x1xf32> to vector<16x384xf32>
    %73 = arith.addf %70, %72 : vector<16x384xf32>
    %74 = vector.broadcast %1 : vector<1x384xf32> to vector<16x384xf32>
    %75 = arith.mulf %73, %74 : vector<16x384xf32>
    %76 = vector.extract_strided_slice %75 {offsets = [0, 367], sizes = [16, 17], strides = [1, 1]} : vector<16x384xf32> to vector<16x17xf32>
    %77 = vector.extract_strided_slice %75 {offsets = [0, 0], sizes = [16, 367], strides = [1, 1]} : vector<16x384xf32> to vector<16x367xf32>
    %78 = tpu.concatenate %76, %77 in 1 : vector<16x17xf32>, vector<16x367xf32> -> vector<16x384xf32>
    %79 = vector.extract_strided_slice %75 {offsets = [0, 368], sizes = [16, 16], strides = [1, 1]} : vector<16x384xf32> to vector<16x16xf32>
    %80 = vector.extract_strided_slice %75 {offsets = [0, 0], sizes = [16, 368], strides = [1, 1]} : vector<16x384xf32> to vector<16x368xf32>
    %81 = tpu.concatenate %79, %80 in 1 : vector<16x16xf32>, vector<16x368xf32> -> vector<16x384xf32>
    %82 = vector.extract_strided_slice %75 {offsets = [0, 369], sizes = [16, 15], strides = [1, 1]} : vector<16x384xf32> to vector<16x15xf32>
    %83 = vector.extract_strided_slice %75 {offsets = [0, 0], sizes = [16, 369], strides = [1, 1]} : vector<16x384xf32> to vector<16x369xf32>
    %84 = tpu.concatenate %82, %83 in 1 : vector<16x15xf32>, vector<16x369xf32> -> vector<16x384xf32>
    %85 = vector.extract_strided_slice %75 {offsets = [0, 383], sizes = [16, 1], strides = [1, 1]} : vector<16x384xf32> to vector<16x1xf32>
    %86 = vector.extract_strided_slice %75 {offsets = [0, 0], sizes = [16, 383], strides = [1, 1]} : vector<16x384xf32> to vector<16x383xf32>
    %87 = tpu.concatenate %85, %86 in 1 : vector<16x1xf32>, vector<16x383xf32> -> vector<16x384xf32>
    %88 = vector.extract_strided_slice %75 {offsets = [0, 1], sizes = [16, 383], strides = [1, 1]} : vector<16x384xf32> to vector<16x383xf32>
    %89 = vector.extract_strided_slice %75 {offsets = [0, 0], sizes = [16, 1], strides = [1, 1]} : vector<16x384xf32> to vector<16x1xf32>
    %90 = tpu.concatenate %88, %89 in 1 : vector<16x383xf32>, vector<16x1xf32> -> vector<16x384xf32>
    %91 = vector.extract_strided_slice %75 {offsets = [0, 15], sizes = [16, 369], strides = [1, 1]} : vector<16x384xf32> to vector<16x369xf32>
    %92 = vector.extract_strided_slice %75 {offsets = [0, 0], sizes = [16, 15], strides = [1, 1]} : vector<16x384xf32> to vector<16x15xf32>
    %93 = tpu.concatenate %91, %92 in 1 : vector<16x369xf32>, vector<16x15xf32> -> vector<16x384xf32>
    %94 = vector.extract_strided_slice %75 {offsets = [0, 16], sizes = [16, 368], strides = [1, 1]} : vector<16x384xf32> to vector<16x368xf32>
    %95 = vector.extract_strided_slice %75 {offsets = [0, 0], sizes = [16, 16], strides = [1, 1]} : vector<16x384xf32> to vector<16x16xf32>
    %96 = tpu.concatenate %94, %95 in 1 : vector<16x368xf32>, vector<16x16xf32> -> vector<16x384xf32>
    %97 = vector.extract_strided_slice %75 {offsets = [0, 17], sizes = [16, 367], strides = [1, 1]} : vector<16x384xf32> to vector<16x367xf32>
    %98 = vector.extract_strided_slice %75 {offsets = [0, 0], sizes = [16, 17], strides = [1, 1]} : vector<16x384xf32> to vector<16x17xf32>
    %99 = tpu.concatenate %97, %98 in 1 : vector<16x367xf32>, vector<16x17xf32> -> vector<16x384xf32>
    %100 = tpu.concatenate %78, %81, %84, %87, %75, %90, %93, %96, %99 in 0 : vector<16x384xf32>, vector<16x384xf32>, vector<16x384xf32>, vector<16x384xf32>, vector<16x384xf32>, vector<16x384xf32>, vector<16x384xf32>, vector<16x384xf32>, vector<16x384xf32> -> vector<144x384xf32>
    %c0_7 = arith.constant 0 : index
    %c0_8 = arith.constant 0 : index
    %101 = vector.load %arg4[%c0_7, %c0_8] : memref<24x144xf32, #tpu.memory_space<vmem>>, vector<24x144xf32>
    %cst = arith.constant dense<0.000000e+00> : vector<24x384xf32>
    %102 = tpu.matmul %101, %100, %cst {dimension_numbers = #tpu.dot_dimension_numbers<[1], [0], [0], [1], [0, 0, 1, 1], [], []>} : vector<24x144xf32>, vector<144x384xf32>, vector<24x384xf32> -> vector<24x384xf32>
    %c0_9 = arith.constant 0 : index
    %c0_10 = arith.constant 0 : index
    %103 = vector.load %arg5[%c0_9, %c0_10] : memref<24x1xf32, #tpu.memory_space<vmem>>, vector<24x1xf32>
    %104 = vector.broadcast %103 : vector<24x1xf32> to vector<24x384xf32>
    %105 = arith.addf %102, %104 : vector<24x384xf32>
    %c0_11 = arith.constant 0 : index
    %c0_12 = arith.constant 0 : index
    %106 = vector.load %arg6[%c0_11, %c0_12] : memref<24x384xf32, #tpu.memory_space<vmem>>, vector<24x384xf32>
    tpu.vector_store %arg6[%c0_11, %c0_12], %105 {strides = array<i32>} : memref<24x384xf32, #tpu.memory_space<vmem>>, vector<24x384xf32>,
    return
  }
}

</mosaic_0001>

<llo_original>
// kernel: model_forward.1
$region0: #{model_forward.1}
  #allocation0 [shape = 'u32[]', space=smem, size = 0x4, offset = 0x4, fixed_abs, tag = 'smem constant byte address 0x4 - core index']
  #allocation1 [shape = 'u32[144,128]{1,0:T(1,128)}', space=vmem, size = 0x12000, scoped, tag = 'internal scratch']
  %s0 = inlined_call_operand.vmem [shape: f32[1,384], index: 0, kind: input, shape index: {}]
  %s1 = inlined_call_operand.vmem [shape: f32[1,384], index: 1, kind: input, shape index: {}]
  %s2 = inlined_call_operand.vmem [shape: f32[16,9], index: 2, kind: input, shape index: {}]
  %s3 = inlined_call_operand.vmem [shape: f32[16,1], index: 3, kind: input, shape index: {}]
  %s4 = inlined_call_operand.vmem [shape: f32[24,144], index: 4, kind: input, shape index: {}]
  %s5 = inlined_call_operand.vmem [shape: f32[24,1], index: 5, kind: input, shape index: {}]
  %s6 = inlined_call_operand.vmem [shape: f32[24,384], index: 6, kind: output, shape index: {}]
  %s7 = sld [smem:[#allocation0]]
  $region34: #{model_forward.1} parent=0
    _
  %s9 = ssub.s32 1, %s7
  %s10 = scalar_select 0, %s9, %s7
  // Predicated region
  $region2: #{model_forward.1} parent=0 // pred_check
    _
  $region3: #{model_forward.1} parent=0 // pred_check_branch
    %12 = sbr.rel (0) target = $region5
  $region4: #{model_forward.1} parent=0 // pred_region
    _
  $region5: #{model_forward.1} parent=0 // pred_fallthru
    _
  // Predicated region
  $region6: #{model_forward.1} parent=0 // pred_check
    _
  $region7: #{model_forward.1} parent=0 // pred_check_branch
    %14 = sbr.rel (0) target = $region9
  $region8: #{model_forward.1} parent=0 // pred_region
    _
  $region9: #{model_forward.1} parent=0 // pred_fallthru
    _
  // Predicated region
  $region10: #{model_forward.1} parent=0 // pred_check
    _
  $region11: #{model_forward.1} parent=0 // pred_check_branch
    %16 = sbr.rel (0) target = $region13
  $region12: #{model_forward.1} parent=0 // pred_region
    _
  $region13: #{model_forward.1} parent=0 // pred_fallthru
    _
  // Predicated region
  $region14: #{model_forward.1} parent=0 // pred_check
    _
  $region15: #{model_forward.1} parent=0 // pred_check_branch
    %18 = sbr.rel (0) target = $region17
  $region16: #{model_forward.1} parent=0 // pred_region
    _
  $region17: #{model_forward.1} parent=0 // pred_fallthru
    _
  // Predicated region
  $region18: #{model_forward.1} parent=0 // pred_check
    _
  $region19: #{model_forward.1} parent=0 // pred_check_branch
    %20 = sbr.rel (0) target = $region21
  $region20: #{model_forward.1} parent=0 // pred_region
    _
  $region21: #{model_forward.1} parent=0 // pred_fallthru
    _
  // Predicated region
  $region22: #{model_forward.1} parent=0 // pred_check
    _
  $region23: #{model_forward.1} parent=0 // pred_check_branch
    %22 = sbr.rel (0) target = $region25
  $region24: #{model_forward.1} parent=0 // pred_region
    _
  $region25: #{model_forward.1} parent=0 // pred_fallthru
    _
  %v23 = vld [vmem:[%s0] sm:$0x7]
  %v24 = vld [vmem:[%s1] sm:$0x7]
  %v25 = vld [vmem:[%s2] sm:$0xff]
  %v26 = vld [vmem:[%s2 + $0x8] sm:$0xff]
  %v28 = vlaneseq
  %v29 = vshrl.u32 %v28, 7
  %v30 = vsub.s32 2, %v29
  %v31 = vrot.slane %v23, %v30
  %32 = vrot.lane.b32.xlu0 %v31, 17
  %v33 = vpop.permute.xlu0 %32
  %v35 = vlaneseq
  %v36 = vshrl.u32 %v35, 7
  %v37 = vsub.s32 0, %v36
  %v38 = vrot.slane %v23, %v37
  %v39 = vlaneseq
  %v40 = vshrl.u32 %v39, 7
  %v41 = vsub.s32 1, %v40
  %v42 = vrot.slane %v23, %v41
  %43 = vrot.lane.b32.xlu0 %v38, 17
  %v44 = vpop.permute.xlu0 %43
  %45 = vrot.lane.b32.xlu0 %v42, 17
  %v46 = vpop.permute.xlu0 %45
  %vm47 = vcmask 138240
  %v48 = vsel %vm47, %v44, %v46
  %v49 = vsel %vm47, %v46, %v33
  %v53 = vsel %vm47, %v33, %v44
  %55 = vset.pattern.permute.xlu0 0
  %56 = vperm.xlu0 %55, %v25
  %v57 = vpop.permute.xlu0 %56
  %60 = vset.pattern.permute.xlu0 0
  %61 = vperm.xlu0 %60, %v26
  %v62 = vpop.permute.xlu0 %61
  %v64 = vlaneseq
  %v65 = vshrl.u32 %v64, 7
  %v66 = vsub.s32 0, %v65
  %v67 = vrot.slane %v53, %v66
  %v68 = vlaneseq
  %v69 = vshrl.u32 %v68, 7
  %v70 = vsub.s32 0, %v69
  %v71 = vrot.slane %v48, %v70
  %v72 = vlaneseq
  %v73 = vshrl.u32 %v72, 7
  %v74 = vsub.s32 0, %v73
  %v75 = vrot.slane %v49, %v74
  %v76 = vmul.f32 %v57, %v67
  %v77 = vmul.f32 %v57, %v71
  %v78 = vmul.f32 %v57, %v75
  %v79 = vmul.f32 %v62, %v67
  %v80 = vmul.f32 %v62, %v71
  %v81 = vmul.f32 %v62, %v75
  %82 = vrot.lane.b32.xlu0 %v31, 16
  %v83 = vpop.permute.xlu0 %82
  %85 = vrot.lane.b32.xlu0 %v38, 16
  %v86 = vpop.permute.xlu0 %85
  %87 = vrot.lane.b32.xlu0 %v42, 16
  %v88 = vpop.permute.xlu0 %87
  %vm89 = vcmask 130048
  %v90 = vsel %vm89, %v86, %v88
  %v91 = vsel %vm89, %v88, %v83
  %v95 = vsel %vm89, %v83, %v86
  %96 = vset.pattern.permute.xlu0 1
  %97 = vperm.xlu0 %96, %v25
  %v98 = vpop.permute.xlu0 %97
  %100 = vset.pattern.permute.xlu0 1
  %101 = vperm.xlu0 %100, %v26
  %v102 = vpop.permute.xlu0 %101
  %v104 = vlaneseq
  %v105 = vshrl.u32 %v104, 7
  %v106 = vsub.s32 0, %v105
  %v107 = vrot.slane %v95, %v106
  %v108 = vlaneseq
  %v109 = vshrl.u32 %v108, 7
  %v110 = vsub.s32 0, %v109
  %v111 = vrot.slane %v90, %v110
  %v112 = vlaneseq
  %v113 = vshrl.u32 %v112, 7
  %v114 = vsub.s32 0, %v113
  %v115 = vrot.slane %v91, %v114
  %v116 = vmul.f32 %v98, %v107
  %v117 = vmul.f32 %v98, %v111
  %v118 = vmul.f32 %v98, %v115
  %v119 = vmul.f32 %v102, %v107
  %v120 = vmul.f32 %v102, %v111
  %v121 = vmul.f32 %v102, %v115
  %v122 = vadd.f32 %v76, %v116
  %v123 = vadd.f32 %v77, %v117
  %v124 = vadd.f32 %v78, %v118
  %v125 = vadd.f32 %v79, %v119
  %v126 = vadd.f32 %v80, %v120
  %v127 = vadd.f32 %v81, %v121
  %128 = vrot.lane.b32.xlu0 %v31, 15
  %v129 = vpop.permute.xlu0 %128
  %131 = vrot.lane.b32.xlu0 %v38, 15
  %v132 = vpop.permute.xlu0 %131
  %133 = vrot.lane.b32.xlu0 %v42, 15
  %v134 = vpop.permute.xlu0 %133
  %vm135 = vcmask 121856
  %v136 = vsel %vm135, %v132, %v134
  %v137 = vsel %vm135, %v134, %v129
  %v141 = vsel %vm135, %v129, %v132
  %142 = vset.pattern.permute.xlu0 2
  %143 = vperm.xlu0 %142, %v25
  %v144 = vpop.permute.xlu0 %143
  %146 = vset.pattern.permute.xlu0 2
  %147 = vperm.xlu0 %146, %v26
  %v148 = vpop.permute.xlu0 %147
  %v150 = vlaneseq
  %v151 = vshrl.u32 %v150, 7
  %v152 = vsub.s32 0, %v151
  %v153 = vrot.slane %v141, %v152
  %v154 = vlaneseq
  %v155 = vshrl.u32 %v154, 7
  %v156 = vsub.s32 0, %v155
  %v157 = vrot.slane %v136, %v156
  %v158 = vlaneseq
  %v159 = vshrl.u32 %v158, 7
  %v160 = vsub.s32 0, %v159
  %v161 = vrot.slane %v137, %v160
  %v162 = vmul.f32 %v144, %v153
  %v163 = vmul.f32 %v144, %v157
  %v164 = vmul.f32 %v144, %v161
  %v165 = vmul.f32 %v148, %v153
  %v166 = vmul.f32 %v148, %v157
  %v167 = vmul.f32 %v148, %v161
  %v168 = vadd.f32 %v122, %v162
  %v169 = vadd.f32 %v123, %v163
  %v170 = vadd.f32 %v124, %v164
  %v171 = vadd.f32 %v125, %v165
  %v172 = vadd.f32 %v126, %v166
  %v173 = vadd.f32 %v127, %v167
  %174 = vrot.lane.b32.xlu0 %v31, 1
  %v175 = vpop.permute.xlu0 %174
  %177 = vrot.lane.b32.xlu0 %v38, 1
  %v178 = vpop.permute.xlu0 %177
  %179 = vrot.lane.b32.xlu0 %v42, 1
  %v180 = vpop.permute.xlu0 %179
  %vm181 = vcmask 7168
  %v182 = vsel %vm181, %v178, %v180
  %v183 = vsel %vm181, %v180, %v175
  %v187 = vsel %vm181, %v175, %v178
  %188 = vset.pattern.permute.xlu0 3
  %189 = vperm.xlu0 %188, %v25
  %v190 = vpop.permute.xlu0 %189
  %192 = vset.pattern.permute.xlu0 3
  %193 = vperm.xlu0 %192, %v26
  %v194 = vpop.permute.xlu0 %193
  %v196 = vlaneseq
  %v197 = vshrl.u32 %v196, 7
  %v198 = vsub.s32 0, %v197
  %v199 = vrot.slane %v187, %v198
  %v200 = vlaneseq
  %v201 = vshrl.u32 %v200, 7
  %v202 = vsub.s32 0, %v201
  %v203 = vrot.slane %v182, %v202
  %v204 = vlaneseq
  %v205 = vshrl.u32 %v204, 7
  %v206 = vsub.s32 0, %v205
  %v207 = vrot.slane %v183, %v206
  %v208 = vmul.f32 %v190, %v199
  %v209 = vmul.f32 %v190, %v203
  %v210 = vmul.f32 %v190, %v207
  %v211 = vmul.f32 %v194, %v199
  %v212 = vmul.f32 %v194, %v203
  %v213 = vmul.f32 %v194, %v207
  %v214 = vadd.f32 %v168, %v208
  %v215 = vadd.f32 %v169, %v209
  %v216 = vadd.f32 %v170, %v210
  %v217 = vadd.f32 %v171, %v211
  %v218 = vadd.f32 %v172, %v212
  %v219 = vadd.f32 %v173, %v213
  %220 = vset.pattern.permute.xlu0 4
  %221 = vperm.xlu0 %220, %v25
  %v222 = vpop.permute.xlu0 %221
  %224 = vset.pattern.permute.xlu0 4
  %225 = vperm.xlu0 %224, %v26
  %v226 = vpop.permute.xlu0 %225
  %v231 = vmul.f32 %v222, %v38
  %v232 = vmul.f32 %v222, %v42
  %v233 = vmul.f32 %v222, %v31
  %v234 = vmul.f32 %v226, %v38
  %v235 = vmul.f32 %v226, %v42
  %v236 = vmul.f32 %v226, %v31
  %v237 = vadd.f32 %v214, %v231
  %v238 = vadd.f32 %v215, %v232
  %v239 = vadd.f32 %v216, %v233
  %v240 = vadd.f32 %v217, %v234
  %v241 = vadd.f32 %v218, %v235
  %v242 = vadd.f32 %v219, %v236
  %243 = vrot.lane.b32.xlu0 %v38, 127
  %v244 = vpop.permute.xlu0 %243
  %245 = vrot.lane.b32.xlu0 %v42, 127
  %v246 = vpop.permute.xlu0 %245
  %247 = vrot.lane.b32.xlu0 %v31, 127
  %v248 = vpop.permute.xlu0 %247
  %vm249 = vcmask 1039360
  %v250 = vsel %vm249, %v244, %v246
  %v251 = vsel %vm249, %v246, %v248
  %v256 = vsel %vm249, %v248, %v244
  %257 = vset.pattern.permute.xlu0 5
  %258 = vperm.xlu0 %257, %v25
  %v259 = vpop.permute.xlu0 %258
  %261 = vset.pattern.permute.xlu0 5
  %262 = vperm.xlu0 %261, %v26
  %v263 = vpop.permute.xlu0 %262
  %v265 = vlaneseq
  %v266 = vshrl.u32 %v265, 7
  %v267 = vsub.s32 0, %v266
  %v268 = vrot.slane %v250, %v267
  %v269 = vlaneseq
  %v270 = vshrl.u32 %v269, 7
  %v271 = vsub.s32 0, %v270
  %v272 = vrot.slane %v251, %v271
  %v273 = vlaneseq
  %v274 = vshrl.u32 %v273, 7
  %v275 = vsub.s32 0, %v274
  %v276 = vrot.slane %v256, %v275
  %v277 = vmul.f32 %v259, %v268
  %v278 = vmul.f32 %v259, %v272
  %v279 = vmul.f32 %v259, %v276
  %v280 = vmul.f32 %v263, %v268
  %v281 = vmul.f32 %v263, %v272
  %v282 = vmul.f32 %v263, %v276
  %v283 = vadd.f32 %v237, %v277
  %v284 = vadd.f32 %v238, %v278
  %v285 = vadd.f32 %v239, %v279
  %v286 = vadd.f32 %v240, %v280
  %v287 = vadd.f32 %v241, %v281
  %v288 = vadd.f32 %v242, %v282
  %289 = vrot.lane.b32.xlu0 %v38, 113
  %v290 = vpop.permute.xlu0 %289
  %291 = vrot.lane.b32.xlu0 %v42, 113
  %v292 = vpop.permute.xlu0 %291
  %293 = vrot.lane.b32.xlu0 %v31, 113
  %v294 = vpop.permute.xlu0 %293
  %vm295 = vcmask 924672
  %v296 = vsel %vm295, %v290, %v292
  %v297 = vsel %vm295, %v292, %v294
  %v302 = vsel %vm295, %v294, %v290
  %303 = vset.pattern.permute.xlu0 6
  %304 = vperm.xlu0 %303, %v25
  %v305 = vpop.permute.xlu0 %304
  %307 = vset.pattern.permute.xlu0 6
  %308 = vperm.xlu0 %307, %v26
  %v309 = vpop.permute.xlu0 %308
  %v311 = vlaneseq
  %v312 = vshrl.u32 %v311, 7
  %v313 = vsub.s32 0, %v312
  %v314 = vrot.slane %v296, %v313
  %v315 = vlaneseq
  %v316 = vshrl.u32 %v315, 7
  %v317 = vsub.s32 0, %v316
  %v318 = vrot.slane %v297, %v317
  %v319 = vlaneseq
  %v320 = vshrl.u32 %v319, 7
  %v321 = vsub.s32 0, %v320
  %v322 = vrot.slane %v302, %v321
  %v323 = vmul.f32 %v305, %v314
  %v324 = vmul.f32 %v305, %v318
  %v325 = vmul.f32 %v305, %v322
  %v326 = vmul.f32 %v309, %v314
  %v327 = vmul.f32 %v309, %v318
  %v328 = vmul.f32 %v309, %v322
  %v329 = vadd.f32 %v283, %v323
  %v330 = vadd.f32 %v284, %v324
  %v331 = vadd.f32 %v285, %v325
  %v332 = vadd.f32 %v286, %v326
  %v333 = vadd.f32 %v287, %v327
  %v334 = vadd.f32 %v288, %v328
  %335 = vrot.lane.b32.xlu0 %v38, 112
  %v336 = vpop.permute.xlu0 %335
  %337 = vrot.lane.b32.xlu0 %v42, 112
  %v338 = vpop.permute.xlu0 %337
  %339 = vrot.lane.b32.xlu0 %v31, 112
  %v340 = vpop.permute.xlu0 %339
  %vm341 = vcmask 916480
  %v342 = vsel %vm341, %v336, %v338
  %v343 = vsel %vm341, %v338, %v340
  %v348 = vsel %vm341, %v340, %v336
  %349 = vset.pattern.permute.xlu0 7
  %350 = vperm.xlu0 %349, %v25
  %v351 = vpop.permute.xlu0 %350
  %353 = vset.pattern.permute.xlu0 7
  %354 = vperm.xlu0 %353, %v26
  %v355 = vpop.permute.xlu0 %354
  %v357 = vlaneseq
  %v358 = vshrl.u32 %v357, 7
  %v359 = vsub.s32 0, %v358
  %v360 = vrot.slane %v342, %v359
  %v361 = vlaneseq
  %v362 = vshrl.u32 %v361, 7
  %v363 = vsub.s32 0, %v362
  %v364 = vrot.slane %v343, %v363
  %v365 = vlaneseq
  %v366 = vshrl.u32 %v365, 7
  %v367 = vsub.s32 0, %v366
  %v368 = vrot.slane %v348, %v367
  %v369 = vmul.f32 %v351, %v360
  %v370 = vmul.f32 %v351, %v364
  %v371 = vmul.f32 %v351, %v368
  %v372 = vmul.f32 %v355, %v360
  %v373 = vmul.f32 %v355, %v364
  %v374 = vmul.f32 %v355, %v368
  %v375 = vadd.f32 %v329, %v369
  %v376 = vadd.f32 %v330, %v370
  %v377 = vadd.f32 %v331, %v371
  %v378 = vadd.f32 %v332, %v372
  %v379 = vadd.f32 %v333, %v373
  %v380 = vadd.f32 %v334, %v374
  %381 = vrot.lane.b32.xlu0 %v38, 111
  %v382 = vpop.permute.xlu0 %381
  %383 = vrot.lane.b32.xlu0 %v42, 111
  %v384 = vpop.permute.xlu0 %383
  %385 = vrot.lane.b32.xlu0 %v31, 111
  %v386 = vpop.permute.xlu0 %385
  %vm387 = vcmask 908288
  %v388 = vsel %vm387, %v382, %v384
  %v389 = vsel %vm387, %v384, %v386
  %v394 = vsel %vm387, %v386, %v382
  %395 = vset.pattern.permute.xlu0 8
  %396 = vperm.xlu0 %395, %v25
  %v397 = vpop.permute.xlu0 %396
  %399 = vset.pattern.permute.xlu0 8
  %400 = vperm.xlu0 %399, %v26
  %v401 = vpop.permute.xlu0 %400
  %v403 = vlaneseq
  %v404 = vshrl.u32 %v403, 7
  %v405 = vsub.s32 0, %v404
  %v406 = vrot.slane %v388, %v405
  %v407 = vlaneseq
  %v408 = vshrl.u32 %v407, 7
  %v409 = vsub.s32 0, %v408
  %v410 = vrot.slane %v389, %v409
  %v411 = vlaneseq
  %v412 = vshrl.u32 %v411, 7
  %v413 = vsub.s32 0, %v412
  %v414 = vrot.slane %v394, %v413
  %v415 = vmul.f32 %v397, %v406
  %v416 = vmul.f32 %v397, %v410
  %v417 = vmul.f32 %v397, %v414
  %v418 = vmul.f32 %v401, %v406
  %v419 = vmul.f32 %v401, %v410
  %v420 = vmul.f32 %v401, %v414
  %v421 = vadd.f32 %v375, %v415
  %v422 = vadd.f32 %v376, %v416
  %v423 = vadd.f32 %v377, %v417
  %v424 = vadd.f32 %v378, %v418
  %v425 = vadd.f32 %v379, %v419
  %v426 = vadd.f32 %v380, %v420
  %v427 = vld [vmem:[%s3] sm:$0xff]
  %v428 = vld [vmem:[%s3 + $0x8] sm:$0xff]
  %430 = vset.pattern.permute.xlu0 0
  %431 = vperm.xlu0 %430, %v427
  %v432 = vpop.permute.xlu0 %431
  %435 = vset.pattern.permute.xlu0 0
  %436 = vperm.xlu0 %435, %v428
  %v437 = vpop.permute.xlu0 %436
  %v439 = vadd.f32 %v421, %v432
  %v440 = vadd.f32 %v422, %v432
  %v441 = vadd.f32 %v423, %v432
  %v442 = vadd.f32 %v424, %v437
  %v443 = vadd.f32 %v425, %v437
  %v444 = vadd.f32 %v426, %v437
  %v446 = vlaneseq
  %v447 = vshrl.u32 %v446, 7
  %v448 = vsub.s32 0, %v447
  %v449 = vrot.slane %v24, %v448
  %v450 = vlaneseq
  %v451 = vshrl.u32 %v450, 7
  %v452 = vsub.s32 1, %v451
  %v453 = vrot.slane %v24, %v452
  %v454 = vlaneseq
  %v455 = vshrl.u32 %v454, 7
  %v456 = vsub.s32 2, %v455
  %v457 = vrot.slane %v24, %v456
  %v461 = vmul.f32 %v439, %v449
  %v462 = vmul.f32 %v440, %v453
  %v463 = vmul.f32 %v441, %v457
  %v464 = vmul.f32 %v442, %v449
  %v465 = vmul.f32 %v443, %v453
  %v466 = vmul.f32 %v444, %v457
  %469 = vrot.lane.b32.xlu0 %v463, 17
  %v470 = vpop.permute.xlu0 %469
  %471 = vrot.lane.b32.xlu0 %v466, 17
  %v472 = vpop.permute.xlu0 %471
  %479 = vrot.lane.b32.xlu0 %v461, 17
  %v480 = vpop.permute.xlu0 %479
  %481 = vrot.lane.b32.xlu0 %v462, 17
  %v482 = vpop.permute.xlu0 %481
  %483 = vrot.lane.b32.xlu0 %v464, 17
  %v484 = vpop.permute.xlu0 %483
  %485 = vrot.lane.b32.xlu0 %v465, 17
  %v486 = vpop.permute.xlu0 %485
  %v487 = vsel %vm47, %v480, %v482
  %v488 = vsel %vm47, %v482, %v470
  %v489 = vsel %vm47, %v484, %v486
  %v490 = vsel %vm47, %v486, %v472
  %v497 = vsel %vm47, %v470, %v480
  %v498 = vsel %vm47, %v472, %v484
  %499 = vrot.lane.b32.xlu0 %v463, 16
  %v500 = vpop.permute.xlu0 %499
  %501 = vrot.lane.b32.xlu0 %v466, 16
  %v502 = vpop.permute.xlu0 %501
  %505 = vrot.lane.b32.xlu0 %v461, 16
  %v506 = vpop.permute.xlu0 %505
  %507 = vrot.lane.b32.xlu0 %v462, 16
  %v508 = vpop.permute.xlu0 %507
  %509 = vrot.lane.b32.xlu0 %v464, 16
  %v510 = vpop.permute.xlu0 %509
  %511 = vrot.lane.b32.xlu0 %v465, 16
  %v512 = vpop.permute.xlu0 %511
  %v513 = vsel %vm89, %v506, %v508
  %v514 = vsel %vm89, %v508, %v500
  %v515 = vsel %vm89, %v510, %v512
  %v516 = vsel %vm89, %v512, %v502
  %v523 = vsel %vm89, %v500, %v506
  %v524 = vsel %vm89, %v502, %v510
  %525 = vrot.lane.b32.xlu0 %v463, 15
  %v526 = vpop.permute.xlu0 %525
  %527 = vrot.lane.b32.xlu0 %v466, 15
  %v528 = vpop.permute.xlu0 %527
  %531 = vrot.lane.b32.xlu0 %v461, 15
  %v532 = vpop.permute.xlu0 %531
  %533 = vrot.lane.b32.xlu0 %v462, 15
  %v534 = vpop.permute.xlu0 %533
  %535 = vrot.lane.b32.xlu0 %v464, 15
  %v536 = vpop.permute.xlu0 %535
  %537 = vrot.lane.b32.xlu0 %v465, 15
  %v538 = vpop.permute.xlu0 %537
  %v539 = vsel %vm135, %v532, %v534
  %v540 = vsel %vm135, %v534, %v526
  %v541 = vsel %vm135, %v536, %v538
  %v542 = vsel %vm135, %v538, %v528
  %v549 = vsel %vm135, %v526, %v532
  %v550 = vsel %vm135, %v528, %v536
  %551 = vrot.lane.b32.xlu0 %v463, 1
  %v552 = vpop.permute.xlu0 %551
  %553 = vrot.lane.b32.xlu0 %v466, 1
  %v554 = vpop.permute.xlu0 %553
  %557 = vrot.lane.b32.xlu0 %v461, 1
  %v558 = vpop.permute.xlu0 %557
  %559 = vrot.lane.b32.xlu0 %v462, 1
  %v560 = vpop.permute.xlu0 %559
  %561 = vrot.lane.b32.xlu0 %v464, 1
  %v562 = vpop.permute.xlu0 %561
  %563 = vrot.lane.b32.xlu0 %v465, 1
  %v564 = vpop.permute.xlu0 %563
  %v565 = vsel %vm181, %v558, %v560
  %v566 = vsel %vm181, %v560, %v552
  %v567 = vsel %vm181, %v562, %v564
  %v568 = vsel %vm181, %v564, %v554
  %v575 = vsel %vm181, %v552, %v558
  %v576 = vsel %vm181, %v554, %v562
  %577 = vrot.lane.b32.xlu0 %v461, 127
  %v578 = vpop.permute.xlu0 %577
  %579 = vrot.lane.b32.xlu0 %v462, 127
  %v580 = vpop.permute.xlu0 %579
  %581 = vrot.lane.b32.xlu0 %v463, 127
  %v582 = vpop.permute.xlu0 %581
  %583 = vrot.lane.b32.xlu0 %v464, 127
  %v584 = vpop.permute.xlu0 %583
  %585 = vrot.lane.b32.xlu0 %v465, 127
  %v586 = vpop.permute.xlu0 %585
  %587 = vrot.lane.b32.xlu0 %v466, 127
  %v588 = vpop.permute.xlu0 %587
  %v589 = vsel %vm249, %v578, %v580
  %v590 = vsel %vm249, %v580, %v582
  %v591 = vsel %vm249, %v584, %v586
  %v592 = vsel %vm249, %v586, %v588
  %v601 = vsel %vm249, %v582, %v578
  %v602 = vsel %vm249, %v588, %v584
  %603 = vrot.lane.b32.xlu0 %v461, 113
  %v604 = vpop.permute.xlu0 %603
  %605 = vrot.lane.b32.xlu0 %v462, 113
  %v606 = vpop.permute.xlu0 %605
  %607 = vrot.lane.b32.xlu0 %v463, 113
  %v608 = vpop.permute.xlu0 %607
  %609 = vrot.lane.b32.xlu0 %v464, 113
  %v610 = vpop.permute.xlu0 %609
  %611 = vrot.lane.b32.xlu0 %v465, 113
  %v612 = vpop.permute.xlu0 %611
  %613 = vrot.lane.b32.xlu0 %v466, 113
  %v614 = vpop.permute.xlu0 %613
  %v615 = vsel %vm295, %v604, %v606
  %v616 = vsel %vm295, %v606, %v608
  %v617 = vsel %vm295, %v610, %v612
  %v618 = vsel %vm295, %v612, %v614
  %v627 = vsel %vm295, %v608, %v604
  %v628 = vsel %vm295, %v614, %v610
  %629 = vrot.lane.b32.xlu0 %v461, 112
  %v630 = vpop.permute.xlu0 %629
  %631 = vrot.lane.b32.xlu0 %v462, 112
  %v632 = vpop.permute.xlu0 %631
  %633 = vrot.lane.b32.xlu0 %v463, 112
  %v634 = vpop.permute.xlu0 %633
  %635 = vrot.lane.b32.xlu0 %v464, 112
  %v636 = vpop.permute.xlu0 %635
  %637 = vrot.lane.b32.xlu0 %v465, 112
  %v638 = vpop.permute.xlu0 %637
  %639 = vrot.lane.b32.xlu0 %v466, 112
  %v640 = vpop.permute.xlu0 %639
  %v641 = vsel %vm341, %v630, %v632
  %v642 = vsel %vm341, %v632, %v634
  %v643 = vsel %vm341, %v636, %v638
  %v644 = vsel %vm341, %v638, %v640
  %v653 = vsel %vm341, %v634, %v630
  %v654 = vsel %vm341, %v640, %v636
  %655 = vrot.lane.b32.xlu0 %v461, 111
  %v656 = vpop.permute.xlu0 %655
  %657 = vrot.lane.b32.xlu0 %v462, 111
  %v658 = vpop.permute.xlu0 %657
  %659 = vrot.lane.b32.xlu0 %v463, 111
  %v660 = vpop.permute.xlu0 %659
  %661 = vrot.lane.b32.xlu0 %v464, 111
  %v662 = vpop.permute.xlu0 %661
  %663 = vrot.lane.b32.xlu0 %v465, 111
  %v664 = vpop.permute.xlu0 %663
  %665 = vrot.lane.b32.xlu0 %v466, 111
  %v666 = vpop.permute.xlu0 %665
  %v667 = vsel %vm387, %v656, %v658
  %v668 = vsel %vm387, %v658, %v660
  %v669 = vsel %vm387, %v662, %v664
  %v670 = vsel %vm387, %v664, %v666
  %v679 = vsel %vm387, %v660, %v656
  %v680 = vsel %vm387, %v666, %v662
  %v681 = vld [vmem:[%s4] sm:$0xff]
  %v682 = vld [vmem:[%s4 + $0x8] sm:$0xff]
  %v683 = vld [vmem:[%s4 + $0x10] sm:$0xff]
  %v684 = vld [vmem:[%s4 + $0x18] sm:$0xff]
  %v685 = vld [vmem:[%s4 + $0x20] sm:$0xff]
  %v686 = vld [vmem:[%s4 + $0x28] sm:$0xff]
  %v687 = vld [vmem:[%s5] sm:$0xff]
  %v688 = vld [vmem:[%s5 + $0x8] sm:$0xff]
  %v689 = vld [vmem:[%s5 + $0x10] sm:$0xff]
  %691 = vset.pattern.permute.xlu0 0
  %692 = vperm.xlu0 %691, %v687
  %v693 = vpop.permute.xlu0 %692
  %696 = vset.pattern.permute.xlu0 0
  %697 = vperm.xlu0 %696, %v688
  %v698 = vpop.permute.xlu0 %697
  %701 = vset.pattern.permute.xlu0 0
  %702 = vperm.xlu0 %701, %v689
  %v703 = vpop.permute.xlu0 %702
  %v706 = vsel %vm89, %v682, 0
  %v709 = vsel %vm89, %v684, 0
  %v712 = vsel %vm89, %v686, 0
  %714 = vmatprep.subr.mxu0 %v487
  %715 = vmatpush1.msra.mxu0 %v497
  %716 = vmatprep.subr.mxu0 %v489
  %717 = vmatpush1.msra.mxu0 %v498
  %718 = vmatprep.subr.mxu0 %v513
  %719 = vmatpush1.msra.mxu0 %v523
  %720 = vmatprep.subr.mxu0 %v515
  %721 = vmatpush1.msra.mxu0 %v524
  %722 = vmatprep.subr.mxu0 %v539
  %723 = vmatpush1.msra.mxu0 %v549
  %724 = vmatprep.subr.mxu0 %v541
  %725 = vmatpush1.msra.mxu0 %v550
  %726 = vmatprep.subr.mxu0 %v565
  %727 = vmatpush1.msra.mxu0 %v575
  %728 = vmatprep.subr.mxu0 %v567
  %729 = vmatpush1.msra.mxu0 %v576
  %730 = vmatprep.subr.mxu0 %v462
  %731 = vmatpush1.msra.mxu0 %v461
  %732 = vmatprep.subr.mxu0 %v465
  %733 = vmatpush1.msra.mxu0 %v464
  %734 = vmatprep.subr.mxu0 %v590
  %735 = vmatpush1.msra.mxu0 %v589
  %736 = vmatprep.subr.mxu0 %v592
  %737 = vmatpush1.msra.mxu0 %v591
  %738 = vmatprep.subr.mxu0 %v616
  %739 = vmatpush1.msra.mxu0 %v615
  %740 = vmatprep.subr.mxu0 %v618
  %741 = vmatpush1.msra.mxu0 %v617
  %742 = vmatprep.subr.mxu0 %v642
  %743 = vmatpush1.msra.mxu0 %v641
  %744 = vmatprep.subr.mxu0 %v644
  %745 = vmatpush1.msra.mxu0 %v643
  %746 = vmatprep.subr.mxu0 %v668
  %747 = vmatpush1.msra.mxu0 %v667
  %748 = vmatprep.subr.mxu0 %v670
  %749 = vmatpush1.msra.mxu0 %v669
  %750 = vmatprep.subr.mxu0 0.0
  %751 = vmatpush1.msra.mxu0 0.0
  %752 = vmatprep.subr.mxu0 0.0
  %753 = vmatpush1.msra.mxu0 0.0
  %754 = vmatprep.subr.mxu0 0.0
  %755 = vmatpush1.msra.mxu0 0.0
  %756 = vmatprep.subr.mxu0 0.0
  %757 = vmatpush1.msra.mxu0 0.0
  %758 = vmatprep.subr.mxu0 0.0
  %759 = vmatpush1.msra.mxu0 0.0
  %760 = vmatprep.subr.mxu0 0.0
  %761 = vmatpush1.msra.mxu0 0.0
  %762 = vmatprep.subr.mxu0 0.0
  %763 = vmatpush1.msra.mxu0 0.0
  %764 = vmatprep.subr.mxu0 0.0
  %765 = vmatpush1.msra.mxu0 0.0
  %766 = vmatprep.subr.mxu0 0.0
  %767 = vmatpush1.msra.mxu0 0.0
  %768 = vmatprep.subr.mxu0 0.0
  %769 = vmatpush1.msra.mxu0 0.0
  %770 = vmatprep.subr.mxu0 0.0
  %771 = vmatpush1.msra.mxu0 0.0
  %772 = vmatprep.subr.mxu0 0.0
  %773 = vmatpush1.msra.mxu0 0.0
  %774 = vmatprep.subr.mxu0 0.0
  %775 = vmatpush1.msra.mxu0 0.0
  %776 = vmatprep.subr.mxu0 0.0
  %777 = vmatpush1.msra.mxu0 0.0
  %778 = vmatprep.mubr.f32.mxu0 %v706
  %779 = vmatmul.mubr.f32.gmra.mrb[0].mxu0 %v681
  %v780 = vpop.f32.mrb[0].mxu0
  %v781 = vadd.f32 %v693, %v780
  %v782 = vpop.f32.mrb[0].mxu0
  %v783 = vadd.f32 %v693, %v782
  %784 = vmatprep.mubr.f32.mxu0 %v709
  %785 = vmatmul.mubr.f32.gmra.mrb[0].mxu0 %v683
  %v786 = vpop.f32.mrb[0].mxu0
  %v787 = vadd.f32 %v698, %v786
  %v788 = vpop.f32.mrb[0].mxu0
  %v789 = vadd.f32 %v698, %v788
  %790 = vmatprep.mubr.f32.mxu0 %v712
  %791 = vmatmul.mubr.f32.gmra.mrb[0].mxu0 %v685
  %v792 = vpop.f32.mrb[0].mxu0
  %v793 = vadd.f32 %v703, %v792
  %v794 = vpop.f32.mrb[0].mxu0
  %v795 = vadd.f32 %v703, %v794
  %796 = vdwg.mxu0
  %797 = vmatprep.subr.mxu0 0.0
  %798 = vmatpush1.msra.mxu0 %v488
  %799 = vmatprep.subr.mxu0 0.0
  %800 = vmatpush1.msra.mxu0 %v490
  %801 = vmatprep.subr.mxu0 0.0
  %802 = vmatpush1.msra.mxu0 %v514
  %803 = vmatprep.subr.mxu0 0.0
  %804 = vmatpush1.msra.mxu0 %v516
  %805 = vmatprep.subr.mxu0 0.0
  %806 = vmatpush1.msra.mxu0 %v540
  %807 = vmatprep.subr.mxu0 0.0
  %808 = vmatpush1.msra.mxu0 %v542
  %809 = vmatprep.subr.mxu0 0.0
  %810 = vmatpush1.msra.mxu0 %v566
  %811 = vmatprep.subr.mxu0 0.0
  %812 = vmatpush1.msra.mxu0 %v568
  %813 = vmatprep.subr.mxu0 0.0
  %814 = vmatpush1.msra.mxu0 %v463
  %815 = vmatprep.subr.mxu0 0.0
  %816 = vmatpush1.msra.mxu0 %v466
  %817 = vmatprep.subr.mxu0 0.0
  %818 = vmatpush1.msra.mxu0 %v601
  %819 = vmatprep.subr.mxu0 0.0
  %820 = vmatpush1.msra.mxu0 %v602
  %821 = vmatprep.subr.mxu0 0.0
  %822 = vmatpush1.msra.mxu0 %v627
  %823 = vmatprep.subr.mxu0 0.0
  %824 = vmatpush1.msra.mxu0 %v628
  %825 = vmatprep.subr.mxu0 0.0
  %826 = vmatpush1.msra.mxu0 %v653
  %827 = vmatprep.subr.mxu0 0.0
  %828 = vmatpush1.msra.mxu0 %v654
  %829 = vmatprep.subr.mxu0 0.0
  %830 = vmatpush1.msra.mxu0 %v679
  %831 = vmatprep.subr.mxu0 0.0
  %832 = vmatpush1.msra.mxu0 %v680
  %833 = vmatprep.subr.mxu0 0.0
  %834 = vmatpush1.msra.mxu0 0.0
  %835 = vmatprep.subr.mxu0 0.0
  %836 = vmatpush1.msra.mxu0 0.0
  %837 = vmatprep.subr.mxu0 0.0
  %838 = vmatpush1.msra.mxu0 0.0
  %839 = vmatprep.subr.mxu0 0.0
  %840 = vmatpush1.msra.mxu0 0.0
  %841 = vmatprep.subr.mxu0 0.0
  %842 = vmatpush1.msra.mxu0 0.0
  %843 = vmatprep.subr.mxu0 0.0
  %844 = vmatpush1.msra.mxu0 0.0
  %845 = vmatprep.subr.mxu0 0.0
  %846 = vmatpush1.msra.mxu0 0.0
  %847 = vmatprep.subr.mxu0 0.0
  %848 = vmatpush1.msra.mxu0 0.0
  %849 = vmatprep.subr.mxu0 0.0
  %850 = vmatpush1.msra.mxu0 0.0
  %851 = vmatprep.subr.mxu0 0.0
  %852 = vmatpush1.msra.mxu0 0.0
  %853 = vmatprep.subr.mxu0 0.0
  %854 = vmatpush1.msra.mxu0 0.0
  %855 = vmatprep.subr.mxu0 0.0
  %856 = vmatpush1.msra.mxu0 0.0
  %857 = vmatprep.subr.mxu0 0.0
  %858 = vmatpush1.msra.mxu0 0.0
  %859 = vmatprep.subr.mxu0 0.0
  %860 = vmatpush1.msra.mxu0 0.0
  %861 = vmatprep.mubr.f32.mxu0 %v706
  %862 = vmatmul.mubr.f32.gmra.mrb[0].mxu0 %v681
  %v863 = vpop.f32.mrb[0].mxu0
  %v864 = vadd.f32 %v693, %v863
  %v865 = vpop.f32.mrb[0].mxu0
  %866 = vmatprep.mubr.f32.mxu0 %v709
  %867 = vmatmul.mubr.f32.gmra.mrb[0].mxu0 %v683
  %v868 = vpop.f32.mrb[0].mxu0
  %v869 = vadd.f32 %v698, %v868
  %v870 = vpop.f32.mrb[0].mxu0
  %871 = vmatprep.mubr.f32.mxu0 %v712
  %872 = vmatmul.mubr.f32.gmra.mrb[0].mxu0 %v685
  %v873 = vpop.f32.mrb[0].mxu0
  %v874 = vadd.f32 %v703, %v873
  %v875 = vpop.f32.mrb[0].mxu0
  %876 = vdwg.mxu0
  %877 = vst [vmem:[%s6] sm:$0xff] %v781
  %878 = vst [vmem:[%s6 + $0x8] sm:$0xff] %v783
  %879 = vst [vmem:[%s6 + $0x10] sm:$0xff] %v864
  %880 = vst [vmem:[%s6 + $0x18] sm:$0xff] %v787
  %881 = vst [vmem:[%s6 + $0x20] sm:$0xff] %v789
  %882 = vst [vmem:[%s6 + $0x28] sm:$0xff] %v869
  %883 = vst [vmem:[%s6 + $0x30] sm:$0xff] %v793
  %884 = vst [vmem:[%s6 + $0x38] sm:$0xff] %v795
  %885 = vst [vmem:[%s6 + $0x40] sm:$0xff] %v874
  // Predicated region
  $region26: #{model_forward.1} parent=0 // pred_check
    _
  $region27: #{model_forward.1} parent=0 // pred_check_branch
    %887 = sbr.rel (0) target = $region29
  $region28: #{model_forward.1} parent=0 // pred_region
    _
  $region29: #{model_forward.1} parent=0 // pred_fallthru
    _
  // Predicated region
  $region30: #{model_forward.1} parent=0 // pred_check
    _
  $region31: #{model_forward.1} parent=0 // pred_check_branch
    %889 = sbr.rel (0) target = $region33
  $region32: #{model_forward.1} parent=0 // pred_region
    _
  $region33: #{model_forward.1} parent=0 // pred_fallthru
    _

</llo_original>
